<compile_context>
chip_gen: v7x
topology: tpu7x:2x2x1
jax: 0.10.0
libtpu: 0.0.40
codegen_flags: <defaults>
</compile_context>

<pallas_src>
import jax
import jax.numpy as jnp
from jax import lax
from jax.experimental import pallas as pl
from jax.experimental.pallas import tpu as pltpu

# ---- static dims implied by the module ----
L_IN = 39
C1, K1 = 2, 5
C2, K2 = 3, 6
L1 = L_IN - K1 + 1          # 35
L2 = L1 - K2 + 1            # 30
F1 = C1 * L1                # 70
F2 = C2 * L2                # 90 == 3 * 5 * 6
H = 100


def _round_up(x, m):
    return (x + m - 1) // m * m


def _select_tiling():
    """Pick (max batch-lane tile, scoped VMEM limit) from the chip's VMEM size.

    Per-tile f32 footprint is ~1 KB per lane (double-buffered (TB,39) x tile,
    (70,TB)+(90,TB) intermediates, (1,TB) output), so TB=32768 is ~40 MB and
    TB=16384 is ~20 MB.
    """
    vmem_bytes = 64 * 1024 * 1024                       # conservative fallback
    try:
        vmem_bytes = int(pltpu.get_tpu_info().vmem_capacity_bytes)
    except Exception:
        pass
    if vmem_bytes >= 100 * 1024 * 1024:                 # v5e / v6e: 128 MiB
        return 32768, 96 * 1024 * 1024
    if vmem_bytes >= 48 * 1024 * 1024:                  # v7x: 64 MiB per TC
        return 16384, 48 * 1024 * 1024
    return 4096, min(vmem_bytes * 3 // 4, 16 * 1024 * 1024)   # older parts


# ---------------------------------------------------------------------------
# Kernel: batch on the lane axis of every intermediate.
#   x    : (TB, L_IN)   natural batch-major block (one contiguous DMA)
#   w1T  : (F1, L_IN)   banded conv1 weights (channel-major rows)
#   b1c  : (F1, 1)
#   w2T  : (F2, F1)     banded conv2 weights (row order == PyTorch flatten)
#   b2c  : (F2, 1)
#   w34  : (1, F2)      fused  Linear(90->100) @ Linear(100->1)
#   b34  : (1,)         SMEM scalar
#   out  : (1, 1, TB)   lane-dense output slab for this batch tile
# ---------------------------------------------------------------------------
def cnn1d_kernel(x_ref, w1T_ref, b1_ref, w2T_ref, b2_ref, w34_ref, b34_ref,
                 out_ref):
    xb = x_ref[...]                                              # (TB, 39)

    # conv1 + ReLU: contract the last axis of both operands -> (70, TB).
    # This is the MXU-native "A @ B^T" form, so no relayout of the batch-major
    # x block is needed and batch ends up on lanes.
    a1 = lax.dot_general(w1T_ref[...], xb, (((1,), (1,)), ((), ())),
                         preferred_element_type=jnp.float32)
    a1 = jnp.maximum(a1 + b1_ref[...], 0.0)                      # (70, TB)

    # conv2 + ReLU as a banded matmul; rows already in channel-major
    # (flatten) order, so no concatenate is needed.
    a2 = jnp.dot(w2T_ref[...], a1, preferred_element_type=jnp.float32)
    a2 = jnp.maximum(a2 + b2_ref[...], 0.0)                      # (90, TB)

    # fused Linear(90->100) -> Linear(100->1)   (no activation in between)
    y = jnp.dot(w34_ref[...], a2, preferred_element_type=jnp.float32)
    y = y + b34_ref[0]                                           # (1, TB)

    out_ref[...] = y[None]                                       # (1, 1, TB)


# ---------------------------------------------------------------------------
# Wrapper-side weight preparation (trace-time, tiny shapes).
# ---------------------------------------------------------------------------
def _band_conv1(w1):
    """w1 (C1, 1, K1) -> transposed band (C1*L1, L_IN):
       band[oc*L1 + t, t + k] = w1[oc, 0, k]."""
    blocks = []
    for oc in range(C1):
        m = jnp.zeros((L_IN, L1), jnp.float32)
        for k in range(K1):
            m = m + w1[oc, 0, k] * jnp.eye(L_IN, L1, -k, dtype=jnp.float32)
        blocks.append(m)
    return jnp.concatenate(blocks, axis=1).T                     # (70, 39)


def _band_conv2(w2):
    """w2 (C2, C1, K2) -> transposed band (C2*L2, C1*L1):
       band[oc*L2 + t, ic*L1 + t + k] = w2[oc, ic, k].
       Row order == PyTorch channel-major flatten of the (B, 3, 30) output."""
    cols = []
    for oc in range(C2):
        in_blocks = []
        for ic in range(C1):
            m = jnp.zeros((L1, L2), jnp.float32)
            for k in range(K2):
                m = m + w2[oc, ic, k] * jnp.eye(L1, L2, -k, dtype=jnp.float32)
            in_blocks.append(m)
        cols.append(jnp.concatenate(in_blocks, axis=0))          # (70, 30)
    return jnp.concatenate(cols, axis=1).T                       # (90, 70)


def mycnn1d_forward(x, params):
    """x: (B, 1, L_IN) float32 (PyTorch NCL). Returns (B, 1) float32."""
    w1, b1, w2, b2, w3, b3, w4, b4 = params
    B = x.shape[0]

    max_tb, vmem_limit = _select_tiling()

    # ---- batch tiling (batch on lanes inside the kernel) ----
    TB = min(max_tb, _round_up(B, 128))
    if B >= 256:
        # Keep >= 2 grid steps so the "parallel" batch axis can shard across
        # TensorCores on multi-TC chips (v7x / megacore); costs one extra
        # ~0.35 us step on single-TC parts.
        # TODO(synk): try dimension_semantics=(pltpu.CORE_PARALLEL,) on v7x.
        TB = min(TB, _round_up(pl.cdiv(B, 2), 128))
    num_tiles = pl.cdiv(B, TB)

    # Natural batch-major layout; reshape is metadata-only -> no extra HBM pass.
    # The ragged last tile (B % TB != 0) is handled by Pallas block clamping;
    # garbage lanes are discarded by the [:B] slice below.
    x2d = x.reshape(B, L_IN).astype(jnp.float32)

    # ---- conv weights as banded matrices, biases as columns ----
    w1T = _band_conv1(w1.astype(jnp.float32))                     # (70, 39)
    b1c = jnp.repeat(b1.astype(jnp.float32), L1).reshape(F1, 1)   # (70, 1)
    w2T = _band_conv2(w2.astype(jnp.float32))                     # (90, 70)
    b2c = jnp.repeat(b2.astype(jnp.float32), L2).reshape(F2, 1)   # (90, 1)

    # ---- fuse the two Linear layers (no activation between them) ----
    w3f = w3.astype(jnp.float32)                                  # (100, 90)
    w4f = w4.astype(jnp.float32)                                  # (1, 100)
    w34 = jnp.dot(w4f, w3f)                                       # (1, 90)
    b34 = (jnp.dot(w4f, b3.astype(jnp.float32)) +
           b4.astype(jnp.float32)).reshape(1)                     # (1,) SMEM

    def full(shape):
        return pl.BlockSpec(shape, lambda i: (0,) * len(shape))

    flops = 2 * B * (F1 * L_IN + F2 * F1 + F2)
    weight_bytes = 4 * (F1 * L_IN + F1 + F2 * F1 + F2 + F2 + 1)
    cost = pl.CostEstimate(flops=flops, transcendentals=0,
                           bytes_accessed=4 * B * L_IN + 4 * B + weight_bytes)

    out = pl.pallas_call(
        cnn1d_kernel,
        out_shape=jax.ShapeDtypeStruct((num_tiles, 1, TB), jnp.float32),
        grid=(num_tiles,),
        in_specs=[
            pl.BlockSpec((TB, L_IN), lambda i: (i, 0)),   # x batch tile
            full((F1, L_IN)), full((F1, 1)),              # conv1 band + bias
            full((F2, F1)),   full((F2, 1)),              # conv2 band + bias
            full((1, F2)),                                # fused fc weight
            pl.BlockSpec(memory_space=pltpu.MemorySpace.SMEM),  # fused fc bias
        ],
        out_specs=pl.BlockSpec((1, 1, TB), lambda i: (i, 0, 0)),
        compiler_params=pltpu.CompilerParams(
            dimension_semantics=("parallel",),
            vmem_limit_bytes=vmem_limit),
        cost_estimate=cost,
    )(x2d, w1T, b1c, w2T, b2c, w34, b34)

    # (num_tiles, 1, TB) -> (B, 1), dropping padded/ragged lanes.
    return out.reshape(num_tiles * TB)[:B].reshape(B, 1)


# ---------------------------------------------------------------------------
# Parameter init (PyTorch-style) and pure-JAX reference.
# ---------------------------------------------------------------------------
def init_params(key):
    ks = jax.random.split(key, 8)

    def u(k, shape, fan_in):
        bound = 1.0 / float(fan_in) ** 0.5
        return jax.random.uniform(k, shape, jnp.float32, -bound, bound)

    w1 = u(ks[0], (C1, 1, K1), 1 * K1)      # Conv1d(1, 2, 5)
    b1 = u(ks[1], (C1,),       1 * K1)
    w2 = u(ks[2], (C2, C1, K2), C1 * K2)    # Conv1d(2, 3, 6)
    b2 = u(ks[3], (C2,),        C1 * K2)
    w3 = u(ks[4], (H, F2), F2)              # Linear(90, 100)
    b3 = u(ks[5], (H,),    F2)
    w4 = u(ks[6], (1, H), H)                # Linear(100, 1)
    b4 = u(ks[7], (1,),   H)
    return (w1, b1, w2, b2, w3, b3, w4, b4)


def reference_forward(x, params):
    """Pure-JAX reference mirroring the PyTorch forward exactly."""
    w1, b1, w2, b2, w3, b3, w4, b4 = params
    dn = ('NCH', 'OIH', 'NCH')
    o1 = jax.lax.conv_general_dilated(x, w1, (1,), 'VALID', dimension_numbers=dn)
    o1 = jax.nn.relu(o1 + b1[None, :, None])
    o2 = jax.lax.conv_general_dilated(o1, w2, (1,), 'VALID', dimension_numbers=dn)
    o2 = jax.nn.relu(o2 + b2[None, :, None])
    flat = o2.reshape(o2.shape[0], -1)
    h = flat @ w3.T + b3
    return h @ w4.T + b4


if __name__ == "__main__":
    key = jax.random.PRNGKey(0)
    k_x, k_x2, k_p = jax.random.split(key, 3)

    params = init_params(k_p)
    fwd = jax.jit(mycnn1d_forward)

    # Small case (B=2): single ragged tile.
    B = 2
    x = jax.random.normal(k_x, (B, 1, L_IN), dtype=jnp.float32)   # PyTorch NCL
    out = jax.block_until_ready(fwd(x, params))
    ref = jax.block_until_ready(reference_forward(x, params))
    assert out.shape == (B, 1), out.shape
    assert jnp.allclose(out, ref, atol=1e-4, rtol=1e-4), (out, ref)

    # Multi-tile case with a ragged last tile (exercises the batch grid path).
    B2 = 300
    x2 = jax.random.normal(k_x2, (B2, 1, L_IN), dtype=jnp.float32)
    out2 = jax.block_until_ready(fwd(x2, params))
    ref2 = jax.block_until_ready(reference_forward(x2, params))
    assert out2.shape == (B2, 1), out2.shape
    assert jnp.allclose(out2, ref2, atol=1e-4, rtol=1e-4)

    print("KERNEL_OK")
</pallas_src>

<mosaic_0001>
module attributes {stable_mosaic.version = 11 : i64} {
  func.func @cnn1d_kernel(%arg0: i32, %arg1: memref<128x39xf32, #tpu.memory_space<vmem>>, %arg2: memref<70x39xf32, #tpu.memory_space<vmem>>, %arg3: memref<70x1xf32, #tpu.memory_space<vmem>>, %arg4: memref<90x70xf32, #tpu.memory_space<vmem>>, %arg5: memref<90x1xf32, #tpu.memory_space<vmem>>, %arg6: memref<1x90xf32, #tpu.memory_space<vmem>>, %arg7: memref<1xf32, #tpu.memory_space<smem>>, %arg8: memref<1x1x128xf32, #tpu.memory_space<vmem>>) attributes {dimension_semantics = [#tpu.dimension_semantics<parallel>], iteration_bounds = array<i64: 1>, scalar_prefetch = 0 : i64, scratch_operands = 0 : i64, tpu.core_type = #tpu.core_type<tc>, window_params = [{transform_indices = @transform_0, window_bounds = array<i64: 128, 39>}, {pipeline_mode = #tpu.pipeline_mode<synchronous>, transform_indices = @transform_1, window_bounds = array<i64: 70, 39>}, {pipeline_mode = #tpu.pipeline_mode<synchronous>, transform_indices = @transform_2, window_bounds = array<i64: 70, 1>}, {pipeline_mode = #tpu.pipeline_mode<synchronous>, transform_indices = @transform_3, window_bounds = array<i64: 90, 70>}, {pipeline_mode = #tpu.pipeline_mode<synchronous>, transform_indices = @transform_4, window_bounds = array<i64: 90, 1>}, {pipeline_mode = #tpu.pipeline_mode<synchronous>, transform_indices = @transform_5, window_bounds = array<i64: 1, 90>}, {transform_indices = @transform_6, window_bounds = array<i64: 1>}, {transform_indices = @transform_7, window_bounds = array<i64: 1, 1, 128>}]} {
    %c0 = arith.constant 0 : index
    %c0_0 = arith.constant 0 : index
    %0 = vector.load %arg1[%c0, %c0_0] : memref<128x39xf32, #tpu.memory_space<vmem>>, vector<128x39xf32>
    %c0_1 = arith.constant 0 : index
    %c0_2 = arith.constant 0 : index
    %1 = vector.load %arg2[%c0_1, %c0_2] : memref<70x39xf32, #tpu.memory_space<vmem>>, vector<70x39xf32>
    %cst = arith.constant dense<0.000000e+00> : vector<70x128xf32>
    %2 = tpu.matmul %1, %0, %cst {dimension_numbers = #tpu.dot_dimension_numbers<[1], [1], [0], [0], [0, 0, 1, 0], [], []>} : vector<70x39xf32>, vector<128x39xf32>, vector<70x128xf32> -> vector<70x128xf32>
    %c0_3 = arith.constant 0 : index
    %c0_4 = arith.constant 0 : index
    %3 = vector.load %arg3[%c0_3, %c0_4] : memref<70x1xf32, #tpu.memory_space<vmem>>, vector<70x1xf32>
    %4 = vector.broadcast %3 : vector<70x1xf32> to vector<70x128xf32>
    %5 = arith.addf %2, %4 : vector<70x128xf32>
    %cst_5 = arith.constant 0.000000e+00 : f32
    %6 = vector.broadcast %cst_5 : f32 to vector<70x128xf32>
    %7 = arith.maximumf %5, %6 : vector<70x128xf32>
    %c0_6 = arith.constant 0 : index
    %c0_7 = arith.constant 0 : index
    %8 = vector.load %arg4[%c0_6, %c0_7] : memref<90x70xf32, #tpu.memory_space<vmem>>, vector<90x70xf32>
    %cst_8 = arith.constant dense<0.000000e+00> : vector<90x128xf32>
    %9 = tpu.matmul %8, %7, %cst_8 {dimension_numbers = #tpu.dot_dimension_numbers<[1], [0], [0], [1], [0, 0, 1, 1], [], []>} : vector<90x70xf32>, vector<70x128xf32>, vector<90x128xf32> -> vector<90x128xf32>
    %c0_9 = arith.constant 0 : index
    %c0_10 = arith.constant 0 : index
    %10 = vector.load %arg5[%c0_9, %c0_10] : memref<90x1xf32, #tpu.memory_space<vmem>>, vector<90x1xf32>
    %11 = vector.broadcast %10 : vector<90x1xf32> to vector<90x128xf32>
    %12 = arith.addf %9, %11 : vector<90x128xf32>
    %cst_11 = arith.constant 0.000000e+00 : f32
    %13 = vector.broadcast %cst_11 : f32 to vector<90x128xf32>
    %14 = arith.maximumf %12, %13 : vector<90x128xf32>
    %c0_12 = arith.constant 0 : index
    %c0_13 = arith.constant 0 : index
    %15 = vector.load %arg6[%c0_12, %c0_13] : memref<1x90xf32, #tpu.memory_space<vmem>>, vector<1x90xf32>
    %cst_14 = arith.constant dense<0.000000e+00> : vector<1x128xf32>
    %16 = tpu.matmul %15, %14, %cst_14 {dimension_numbers = #tpu.dot_dimension_numbers<[1], [0], [0], [1], [0, 0, 1, 1], [], []>} : vector<1x90xf32>, vector<90x128xf32>, vector<1x128xf32> -> vector<1x128xf32>
    %c0_15 = arith.constant 0 : index
    %17 = memref.load %arg7[%c0_15] : memref<1xf32, #tpu.memory_space<smem>>
    %18 = vector.broadcast %17 : f32 to vector<1x128xf32>
    %19 = arith.addf %16, %18 : vector<1x128xf32>
    %20 = vector.shape_cast %19 : vector<1x128xf32> to vector<1x1x128xf32>
    %c0_16 = arith.constant 0 : index
    %c0_17 = arith.constant 0 : index
    %c0_18 = arith.constant 0 : index
    %21 = vector.load %arg8[%c0_16, %c0_17, %c0_18] : memref<1x1x128xf32, #tpu.memory_space<vmem>>, vector<1x1x128xf32>
    tpu.vector_store %arg8[%c0_16, %c0_17, %c0_18], %20 {strides = array<i32>} : memref<1x1x128xf32, #tpu.memory_space<vmem>>, vector<1x1x128xf32>,
    return
  }
  func.func @transform_0(%arg0: i32) -> (i32, i32) {
    %c0_i32 = arith.constant 0 : i32
    %c0_i32_0 = arith.constant 0 : i32
    return %arg0, %c0_i32 : i32, i32
  }
  func.func @transform_1(%arg0: i32) -> (i32, i32) {
    %c0_i32 = arith.constant 0 : i32
    %c0_i32_0 = arith.constant 0 : i32
    %c0_i32_1 = arith.constant 0 : i32
    return %c0_i32, %c0_i32_0 : i32, i32
  }
  func.func @transform_2(%arg0: i32) -> (i32, i32) {
    %c0_i32 = arith.constant 0 : i32
    %c0_i32_0 = arith.constant 0 : i32
    %c0_i32_1 = arith.constant 0 : i32
    return %c0_i32, %c0_i32_0 : i32, i32
  }
  func.func @transform_3(%arg0: i32) -> (i32, i32) {
    %c0_i32 = arith.constant 0 : i32
    %c0_i32_0 = arith.constant 0 : i32
    %c0_i32_1 = arith.constant 0 : i32
    return %c0_i32, %c0_i32_0 : i32, i32
  }
  func.func @transform_4(%arg0: i32) -> (i32, i32) {
    %c0_i32 = arith.constant 0 : i32
    %c0_i32_0 = arith.constant 0 : i32
    %c0_i32_1 = arith.constant 0 : i32
    return %c0_i32, %c0_i32_0 : i32, i32
  }
  func.func @transform_5(%arg0: i32) -> (i32, i32) {
    %c0_i32 = arith.constant 0 : i32
    %c0_i32_0 = arith.constant 0 : i32
    %c0_i32_1 = arith.constant 0 : i32
    return %c0_i32, %c0_i32_0 : i32, i32
  }
  func.func @transform_6(%arg0: i32) -> i32 {
    %c0_i32 = arith.constant 0 : i32
    %c0_i32_0 = arith.constant 0 : i32
    return %c0_i32 : i32
  }
  func.func @transform_7(%arg0: i32) -> (i32, i32, i32) {
    %c0_i32 = arith.constant 0 : i32
    %c0_i32_0 = arith.constant 0 : i32
    %c0_i32_1 = arith.constant 0 : i32
    return %arg0, %c0_i32, %c0_i32_0 : i32, i32, i32
  }
}

</mosaic_0001>

<llo_original>
// kernel: mycnn1d_forward.1
$region0: #{mycnn1d_forward.1}
  #allocation0 [shape = 'u32[]', space=smem, size = 0x4, offset = 0x4, fixed_abs, tag = 'smem constant byte address 0x4 - core index']
  #allocation1 [shape = 'u32[144,128]{1,0:T(1,128)}', space=vmem, size = 0x12000, scoped, tag = 'internal scratch']
  #allocation2 [shape = 'f32[1]{0:T(128)S(6)}', space=smem, size = 0x200, scoped, tag = 'scoped memory for mycnn1d_forward.1']
  %s0 = inlined_call_operand.vmem [shape: f32[2,39], index: 0, kind: input, shape index: {}]
  %s1 = inlined_call_operand.vmem [shape: f32[70,39], index: 1, kind: input, shape index: {}]
  %s2 = inlined_call_operand.vmem [shape: f32[70,1], index: 2, kind: input, shape index: {}]
  %s3 = inlined_call_operand.vmem [shape: f32[90,70], index: 3, kind: input, shape index: {}]
  %s4 = inlined_call_operand.vmem [shape: f32[90,1], index: 4, kind: input, shape index: {}]
  %s5 = inlined_call_operand.vmem [shape: f32[1,90], index: 5, kind: input, shape index: {}]
  %s6 = inlined_call_operand.<no memory space> [shape: f32[1], index: 6, kind: input, shape index: {}]
  %s7 = inlined_call_operand.vmem [shape: f32[1,1,128], index: 7, kind: output, shape index: {}]
  %s8 = sld [smem:[#allocation0]]
  $region38: #{mycnn1d_forward.1} parent=0
    _
  %s10 = ssub.s32 1, %s8
  %s11 = scalar_select 0, %s10, %s8
  %12 = sst [smem:[#allocation2]] %s6
  // Predicated region
  $region2: #{mycnn1d_forward.1} parent=0 // pred_check
    _
  $region3: #{mycnn1d_forward.1} parent=0 // pred_check_branch
    %14 = sbr.rel (0) target = $region5
  $region4: #{mycnn1d_forward.1} parent=0 // pred_region
    _
  $region5: #{mycnn1d_forward.1} parent=0 // pred_fallthru
    _
  // Predicated region
  $region6: #{mycnn1d_forward.1} parent=0 // pred_check
    _
  $region7: #{mycnn1d_forward.1} parent=0 // pred_check_branch
    %16 = sbr.rel (0) target = $region9
  $region8: #{mycnn1d_forward.1} parent=0 // pred_region
    _
  $region9: #{mycnn1d_forward.1} parent=0 // pred_fallthru
    _
  // Predicated region
  $region10: #{mycnn1d_forward.1} parent=0 // pred_check
    _
  $region11: #{mycnn1d_forward.1} parent=0 // pred_check_branch
    %18 = sbr.rel (0) target = $region13
  $region12: #{mycnn1d_forward.1} parent=0 // pred_region
    _
  $region13: #{mycnn1d_forward.1} parent=0 // pred_fallthru
    _
  // Predicated region
  $region14: #{mycnn1d_forward.1} parent=0 // pred_check
    _
  $region15: #{mycnn1d_forward.1} parent=0 // pred_check_branch
    %20 = sbr.rel (0) target = $region17
  $region16: #{mycnn1d_forward.1} parent=0 // pred_region
    _
  $region17: #{mycnn1d_forward.1} parent=0 // pred_fallthru
    _
  // Predicated region
  $region18: #{mycnn1d_forward.1} parent=0 // pred_check
    _
  $region19: #{mycnn1d_forward.1} parent=0 // pred_check_branch
    %22 = sbr.rel (0) target = $region21
  $region20: #{mycnn1d_forward.1} parent=0 // pred_region
    _
  $region21: #{mycnn1d_forward.1} parent=0 // pred_fallthru
    _
  // Predicated region
  $region22: #{mycnn1d_forward.1} parent=0 // pred_check
    _
  $region23: #{mycnn1d_forward.1} parent=0 // pred_check_branch
    %24 = sbr.rel (0) target = $region25
  $region24: #{mycnn1d_forward.1} parent=0 // pred_region
    _
  $region25: #{mycnn1d_forward.1} parent=0 // pred_fallthru
    _
  // Predicated region
  $region26: #{mycnn1d_forward.1} parent=0 // pred_check
    _
  $region27: #{mycnn1d_forward.1} parent=0 // pred_check_branch
    %26 = sbr.rel (0) target = $region29
  $region28: #{mycnn1d_forward.1} parent=0 // pred_region
    _
  $region29: #{mycnn1d_forward.1} parent=0 // pred_fallthru
    _
  %v27 = vld [vmem:[%s0] sm:$0xff]
  %v28 = vld [vmem:[%s0 + $0x8] sm:$0xff]
  %v29 = vld [vmem:[%s0 + $0x10] sm:$0xff]
  %v30 = vld [vmem:[%s0 + $0x18] sm:$0xff]
  %v31 = vld [vmem:[%s0 + $0x20] sm:$0xff]
  %v32 = vld [vmem:[%s0 + $0x28] sm:$0xff]
  %v33 = vld [vmem:[%s0 + $0x30] sm:$0xff]
  %v34 = vld [vmem:[%s0 + $0x38] sm:$0xff]
  %v35 = vld [vmem:[%s0 + $0x40] sm:$0xff]
  %v36 = vld [vmem:[%s0 + $0x48] sm:$0xff]
  %v37 = vld [vmem:[%s0 + $0x50] sm:$0xff]
  %v38 = vld [vmem:[%s0 + $0x58] sm:$0xff]
  %v39 = vld [vmem:[%s0 + $0x60] sm:$0xff]
  %v40 = vld [vmem:[%s0 + $0x68] sm:$0xff]
  %v41 = vld [vmem:[%s0 + $0x70] sm:$0xff]
  %v42 = vld [vmem:[%s0 + $0x78] sm:$0xff]
  %v43 = vld [vmem:[%s1] sm:$0xff]
  %v44 = vld [vmem:[%s1 + $0x8] sm:$0xff]
  %v45 = vld [vmem:[%s1 + $0x10] sm:$0xff]
  %v46 = vld [vmem:[%s1 + $0x18] sm:$0xff]
  %v47 = vld [vmem:[%s1 + $0x20] sm:$0xff]
  %v48 = vld [vmem:[%s1 + $0x28] sm:$0xff]
  %v49 = vld [vmem:[%s1 + $0x30] sm:$0xff]
  %v50 = vld [vmem:[%s1 + $0x38] sm:$0xff]
  %v51 = vld [vmem:[%s1 + $0x40] sm:$0x3f]
  %v52 = vld [vmem:[%s2] sm:$0xff]
  %v53 = vld [vmem:[%s2 + $0x8] sm:$0xff]
  %v54 = vld [vmem:[%s2 + $0x10] sm:$0xff]
  %v55 = vld [vmem:[%s2 + $0x18] sm:$0xff]
  %v56 = vld [vmem:[%s2 + $0x20] sm:$0xff]
  %v57 = vld [vmem:[%s2 + $0x28] sm:$0xff]
  %v58 = vld [vmem:[%s2 + $0x30] sm:$0xff]
  %v59 = vld [vmem:[%s2 + $0x38] sm:$0xff]
  %v60 = vld [vmem:[%s2 + $0x40] sm:$0x3f]
  %62 = vset.pattern.permute.xlu0 0
  %63 = vperm.xlu0 %62, %v52
  %v64 = vpop.permute.xlu0 %63
  %67 = vset.pattern.permute.xlu0 0
  %68 = vperm.xlu0 %67, %v53
  %v69 = vpop.permute.xlu0 %68
  %72 = vset.pattern.permute.xlu0 0
  %73 = vperm.xlu0 %72, %v54
  %v74 = vpop.permute.xlu0 %73
  %77 = vset.pattern.permute.xlu0 0
  %78 = vperm.xlu0 %77, %v55
  %v79 = vpop.permute.xlu0 %78
  %82 = vset.pattern.permute.xlu0 0
  %83 = vperm.xlu0 %82, %v56
  %v84 = vpop.permute.xlu0 %83
  %87 = vset.pattern.permute.xlu0 0
  %88 = vperm.xlu0 %87, %v57
  %v89 = vpop.permute.xlu0 %88
  %92 = vset.pattern.permute.xlu0 0
  %93 = vperm.xlu0 %92, %v58
  %v94 = vpop.permute.xlu0 %93
  %97 = vset.pattern.permute.xlu0 0
  %98 = vperm.xlu0 %97, %v59
  %v99 = vpop.permute.xlu0 %98
  %102 = vset.pattern.permute.xlu0 0
  %103 = vperm.xlu0 %102, %v60
  %v104 = vpop.permute.xlu0 %103
  %vm106 = vcmask 318464
  %v108 = vsel %vm106, %v43, 0
  %v111 = vsel %vm106, %v44, 0
  %v114 = vsel %vm106, %v45, 0
  %v117 = vsel %vm106, %v46, 0
  %v120 = vsel %vm106, %v47, 0
  %v123 = vsel %vm106, %v48, 0
  %v126 = vsel %vm106, %v49, 0
  %v129 = vsel %vm106, %v50, 0
  %v132 = vsel %vm106, %v51, 0
  %v135 = vsel %vm106, %v27, 0
  %v138 = vsel %vm106, %v28, 0
  %v141 = vsel %vm106, %v29, 0
  %v144 = vsel %vm106, %v30, 0
  %v147 = vsel %vm106, %v31, 0
  %v150 = vsel %vm106, %v32, 0
  %v153 = vsel %vm106, %v33, 0
  %v156 = vsel %vm106, %v34, 0
  %v159 = vsel %vm106, %v35, 0
  %v162 = vsel %vm106, %v36, 0
  %v165 = vsel %vm106, %v37, 0
  %v168 = vsel %vm106, %v38, 0
  %v171 = vsel %vm106, %v39, 0
  %v174 = vsel %vm106, %v40, 0
  %v177 = vsel %vm106, %v41, 0
  %v180 = vsel %vm106, %v42, 0
  %182 = vmatprep.subr.mxu0 0.0
  %183 = vmatpush1.xpose.msra.mxu0 %v135
  %184 = vmatprep.subr.mxu0 0.0
  %185 = vmatpush1.xpose.msra.mxu0 %v138
  %186 = vmatprep.subr.mxu0 0.0
  %187 = vmatpush1.xpose.msra.mxu0 %v141
  %188 = vmatprep.subr.mxu0 0.0
  %189 = vmatpush1.xpose.msra.mxu0 %v144
  %190 = vmatprep.subr.mxu0 0.0
  %191 = vmatpush1.xpose.msra.mxu0 %v147
  %192 = vmatprep.subr.mxu0 0.0
  %193 = vmatpush1.xpose.msra.mxu0 %v150
  %194 = vmatprep.subr.mxu0 0.0
  %195 = vmatpush1.xpose.msra.mxu0 %v153
  %196 = vmatprep.subr.mxu0 0.0
  %197 = vmatpush1.xpose.msra.mxu0 %v156
  %198 = vmatprep.subr.mxu0 0.0
  %199 = vmatpush1.xpose.msra.mxu0 %v159
  %200 = vmatprep.subr.mxu0 0.0
  %201 = vmatpush1.xpose.msra.mxu0 %v162
  %202 = vmatprep.subr.mxu0 0.0
  %203 = vmatpush1.xpose.msra.mxu0 %v165
  %204 = vmatprep.subr.mxu0 0.0
  %205 = vmatpush1.xpose.msra.mxu0 %v168
  %206 = vmatprep.subr.mxu0 0.0
  %207 = vmatpush1.xpose.msra.mxu0 %v171
  %208 = vmatprep.subr.mxu0 0.0
  %209 = vmatpush1.xpose.msra.mxu0 %v174
  %210 = vmatprep.subr.mxu0 0.0
  %211 = vmatpush1.xpose.msra.mxu0 %v177
  %212 = vmatprep.subr.mxu0 0.0
  %213 = vmatpush1.xpose.msra.mxu0 %v180
  %214 = vmatprep.subr.mxu0 0.0
  %215 = vmatpush1.xpose.msra.mxu0 0.0
  %216 = vmatprep.subr.mxu0 0.0
  %217 = vmatpush1.xpose.msra.mxu0 0.0
  %218 = vmatprep.subr.mxu0 0.0
  %219 = vmatpush1.xpose.msra.mxu0 0.0
  %220 = vmatprep.subr.mxu0 0.0
  %221 = vmatpush1.xpose.msra.mxu0 0.0
  %222 = vmatprep.subr.mxu0 0.0
  %223 = vmatpush1.xpose.msra.mxu0 0.0
  %224 = vmatprep.subr.mxu0 0.0
  %225 = vmatpush1.xpose.msra.mxu0 0.0
  %226 = vmatprep.subr.mxu0 0.0
  %227 = vmatpush1.xpose.msra.mxu0 0.0
  %228 = vmatprep.subr.mxu0 0.0
  %229 = vmatpush1.xpose.msra.mxu0 0.0
  %230 = vmatprep.subr.mxu0 0.0
  %231 = vmatpush1.xpose.msra.mxu0 0.0
  %232 = vmatprep.subr.mxu0 0.0
  %233 = vmatpush1.xpose.msra.mxu0 0.0
  %234 = vmatprep.subr.mxu0 0.0
  %235 = vmatpush1.xpose.msra.mxu0 0.0
  %236 = vmatprep.subr.mxu0 0.0
  %237 = vmatpush1.xpose.msra.mxu0 0.0
  %238 = vmatprep.subr.mxu0 0.0
  %239 = vmatpush1.xpose.msra.mxu0 0.0
  %240 = vmatprep.subr.mxu0 0.0
  %241 = vmatpush1.xpose.msra.mxu0 0.0
  %242 = vmatprep.subr.mxu0 0.0
  %243 = vmatpush1.xpose.msra.mxu0 0.0
  %244 = vmatprep.subr.mxu0 0.0
  %245 = vmatpush1.xpose.msra.mxu0 0.0
  %246 = vmatprep.mubr.f32.mxu0 0.0
  %247 = vmatmul.mubr.f32.gmra.mrb[0].mxu0 %v108
  %v248 = vpop.f32.mrb[0].mxu0
  %v249 = vadd.f32 %v64, %v248
  %v250 = vpop.f32.mrb[0].mxu0
  %251 = vmatprep.mubr.f32.mxu0 0.0
  %252 = vmatmul.mubr.f32.gmra.mrb[0].mxu0 %v111
  %v253 = vpop.f32.mrb[0].mxu0
  %v254 = vadd.f32 %v69, %v253
  %v255 = vpop.f32.mrb[0].mxu0
  %256 = vmatprep.mubr.f32.mxu0 0.0
  %257 = vmatmul.mubr.f32.gmra.mrb[0].mxu0 %v114
  %v258 = vpop.f32.mrb[0].mxu0
  %v259 = vadd.f32 %v74, %v258
  %v260 = vpop.f32.mrb[0].mxu0
  %261 = vmatprep.mubr.f32.mxu0 0.0
  %262 = vmatmul.mubr.f32.gmra.mrb[0].mxu0 %v117
  %v263 = vpop.f32.mrb[0].mxu0
  %v264 = vadd.f32 %v79, %v263
  %v265 = vpop.f32.mrb[0].mxu0
  %266 = vmatprep.mubr.f32.mxu0 0.0
  %267 = vmatmul.mubr.f32.gmra.mrb[0].mxu0 %v120
  %v268 = vpop.f32.mrb[0].mxu0
  %v269 = vadd.f32 %v84, %v268
  %v270 = vpop.f32.mrb[0].mxu0
  %271 = vmatprep.mubr.f32.mxu0 0.0
  %272 = vmatmul.mubr.f32.gmra.mrb[0].mxu0 %v123
  %v273 = vpop.f32.mrb[0].mxu0
  %v274 = vadd.f32 %v89, %v273
  %v275 = vpop.f32.mrb[0].mxu0
  %276 = vmatprep.mubr.f32.mxu0 0.0
  %277 = vmatmul.mubr.f32.gmra.mrb[0].mxu0 %v126
  %v278 = vpop.f32.mrb[0].mxu0
  %v279 = vadd.f32 %v94, %v278
  %v280 = vpop.f32.mrb[0].mxu0
  %281 = vmatprep.mubr.f32.mxu0 0.0
  %282 = vmatmul.mubr.f32.gmra.mrb[0].mxu0 %v129
  %v283 = vpop.f32.mrb[0].mxu0
  %v284 = vadd.f32 %v99, %v283
  %v285 = vpop.f32.mrb[0].mxu0
  %286 = vmatprep.mubr.f32.mxu0 0.0
  %287 = vmatmul.mubr.f32.gmra.mrb[0].mxu0 %v132
  %v288 = vpop.f32.mrb[0].mxu0
  %v289 = vadd.f32 %v104, %v288
  %v290 = vpop.f32.mrb[0].mxu0
  %291 = vdwg.mxu0
  %v292 = vmax.f32 %v249, 0.0
  %v293 = vmax.f32 %v254, 0.0
  %v294 = vmax.f32 %v259, 0.0
  %v295 = vmax.f32 %v264, 0.0
  %v296 = vmax.f32 %v269, 0.0
  %v297 = vmax.f32 %v274, 0.0
  %v298 = vmax.f32 %v279, 0.0
  %v299 = vmax.f32 %v284, 0.0
  %v300 = vmax.f32 %v289, 0.0
  %v301 = vld [vmem:[%s3] sm:$0xff]
  %v302 = vld [vmem:[%s3 + $0x8] sm:$0xff]
  %v303 = vld [vmem:[%s3 + $0x10] sm:$0xff]
  %v304 = vld [vmem:[%s3 + $0x18] sm:$0xff]
  %v305 = vld [vmem:[%s3 + $0x20] sm:$0xff]
  %v306 = vld [vmem:[%s3 + $0x28] sm:$0xff]
  %v307 = vld [vmem:[%s3 + $0x30] sm:$0xff]
  %v308 = vld [vmem:[%s3 + $0x38] sm:$0xff]
  %v309 = vld [vmem:[%s3 + $0x40] sm:$0xff]
  %v310 = vld [vmem:[%s3 + $0x48] sm:$0xff]
  %v311 = vld [vmem:[%s3 + $0x50] sm:$0xff]
  %v312 = vld [vmem:[%s3 + $0x58] sm:$0x3]
  %v313 = vld [vmem:[%s4] sm:$0xff]
  %v314 = vld [vmem:[%s4 + $0x8] sm:$0xff]
  %v315 = vld [vmem:[%s4 + $0x10] sm:$0xff]
  %v316 = vld [vmem:[%s4 + $0x18] sm:$0xff]
  %v317 = vld [vmem:[%s4 + $0x20] sm:$0xff]
  %v318 = vld [vmem:[%s4 + $0x28] sm:$0xff]
  %v319 = vld [vmem:[%s4 + $0x30] sm:$0xff]
  %v320 = vld [vmem:[%s4 + $0x38] sm:$0xff]
  %v321 = vld [vmem:[%s4 + $0x40] sm:$0xff]
  %v322 = vld [vmem:[%s4 + $0x48] sm:$0xff]
  %v323 = vld [vmem:[%s4 + $0x50] sm:$0xff]
  %v324 = vld [vmem:[%s4 + $0x58] sm:$0x3]
  %326 = vset.pattern.permute.xlu0 0
  %327 = vperm.xlu0 %326, %v313
  %v328 = vpop.permute.xlu0 %327
  %331 = vset.pattern.permute.xlu0 0
  %332 = vperm.xlu0 %331, %v314
  %v333 = vpop.permute.xlu0 %332
  %336 = vset.pattern.permute.xlu0 0
  %337 = vperm.xlu0 %336, %v315
  %v338 = vpop.permute.xlu0 %337
  %341 = vset.pattern.permute.xlu0 0
  %342 = vperm.xlu0 %341, %v316
  %v343 = vpop.permute.xlu0 %342
  %346 = vset.pattern.permute.xlu0 0
  %347 = vperm.xlu0 %346, %v317
  %v348 = vpop.permute.xlu0 %347
  %351 = vset.pattern.permute.xlu0 0
  %352 = vperm.xlu0 %351, %v318
  %v353 = vpop.permute.xlu0 %352
  %356 = vset.pattern.permute.xlu0 0
  %357 = vperm.xlu0 %356, %v319
  %v358 = vpop.permute.xlu0 %357
  %361 = vset.pattern.permute.xlu0 0
  %362 = vperm.xlu0 %361, %v320
  %v363 = vpop.permute.xlu0 %362
  %366 = vset.pattern.permute.xlu0 0
  %367 = vperm.xlu0 %366, %v321
  %v368 = vpop.permute.xlu0 %367
  %371 = vset.pattern.permute.xlu0 0
  %372 = vperm.xlu0 %371, %v322
  %v373 = vpop.permute.xlu0 %372
  %376 = vset.pattern.permute.xlu0 0
  %377 = vperm.xlu0 %376, %v323
  %v378 = vpop.permute.xlu0 %377
  %381 = vset.pattern.permute.xlu0 0
  %382 = vperm.xlu0 %381, %v324
  %v383 = vpop.permute.xlu0 %382
  %vm385 = vcmask 572416
  %v387 = vsel %vm385, %v301, 0
  %v390 = vsel %vm385, %v302, 0
  %v393 = vsel %vm385, %v303, 0
  %v396 = vsel %vm385, %v304, 0
  %v399 = vsel %vm385, %v305, 0
  %v402 = vsel %vm385, %v306, 0
  %v405 = vsel %vm385, %v307, 0
  %v408 = vsel %vm385, %v308, 0
  %v411 = vsel %vm385, %v309, 0
  %v414 = vsel %vm385, %v310, 0
  %v417 = vsel %vm385, %v311, 0
  %v420 = vsel %vm385, %v312, 0
  %vm422 = vcmask 1045504
  %v424 = vsel %vm422, %v300, 0
  %426 = vmatprep.subr.mxu0 0.0
  %427 = vmatpush1.msra.mxu0 %v292
  %428 = vmatprep.subr.mxu0 0.0
  %429 = vmatpush1.msra.mxu0 %v293
  %430 = vmatprep.subr.mxu0 0.0
  %431 = vmatpush1.msra.mxu0 %v294
  %432 = vmatprep.subr.mxu0 0.0
  %433 = vmatpush1.msra.mxu0 %v295
  %434 = vmatprep.subr.mxu0 0.0
  %435 = vmatpush1.msra.mxu0 %v296
  %436 = vmatprep.subr.mxu0 0.0
  %437 = vmatpush1.msra.mxu0 %v297
  %438 = vmatprep.subr.mxu0 0.0
  %439 = vmatpush1.msra.mxu0 %v298
  %440 = vmatprep.subr.mxu0 0.0
  %441 = vmatpush1.msra.mxu0 %v299
  %442 = vmatprep.subr.mxu0 0.0
  %443 = vmatpush1.msra.mxu0 %v424
  %444 = vmatprep.subr.mxu0 0.0
  %445 = vmatpush1.msra.mxu0 0.0
  %446 = vmatprep.subr.mxu0 0.0
  %447 = vmatpush1.msra.mxu0 0.0
  %448 = vmatprep.subr.mxu0 0.0
  %449 = vmatpush1.msra.mxu0 0.0
  %450 = vmatprep.subr.mxu0 0.0
  %451 = vmatpush1.msra.mxu0 0.0
  %452 = vmatprep.subr.mxu0 0.0
  %453 = vmatpush1.msra.mxu0 0.0
  %454 = vmatprep.subr.mxu0 0.0
  %455 = vmatpush1.msra.mxu0 0.0
  %456 = vmatprep.subr.mxu0 0.0
  %457 = vmatpush1.msra.mxu0 0.0
  %458 = vmatprep.subr.mxu0 0.0
  %459 = vmatpush1.msra.mxu0 0.0
  %460 = vmatprep.subr.mxu0 0.0
  %461 = vmatpush1.msra.mxu0 0.0
  %462 = vmatprep.subr.mxu0 0.0
  %463 = vmatpush1.msra.mxu0 0.0
  %464 = vmatprep.subr.mxu0 0.0
  %465 = vmatpush1.msra.mxu0 0.0
  %466 = vmatprep.subr.mxu0 0.0
  %467 = vmatpush1.msra.mxu0 0.0
  %468 = vmatprep.subr.mxu0 0.0
  %469 = vmatpush1.msra.mxu0 0.0
  %470 = vmatprep.subr.mxu0 0.0
  %471 = vmatpush1.msra.mxu0 0.0
  %472 = vmatprep.subr.mxu0 0.0
  %473 = vmatpush1.msra.mxu0 0.0
  %474 = vmatprep.subr.mxu0 0.0
  %475 = vmatpush1.msra.mxu0 0.0
  %476 = vmatprep.subr.mxu0 0.0
  %477 = vmatpush1.msra.mxu0 0.0
  %478 = vmatprep.subr.mxu0 0.0
  %479 = vmatpush1.msra.mxu0 0.0
  %480 = vmatprep.subr.mxu0 0.0
  %481 = vmatpush1.msra.mxu0 0.0
  %482 = vmatprep.subr.mxu0 0.0
  %483 = vmatpush1.msra.mxu0 0.0
  %484 = vmatprep.subr.mxu0 0.0
  %485 = vmatpush1.msra.mxu0 0.0
  %486 = vmatprep.subr.mxu0 0.0
  %487 = vmatpush1.msra.mxu0 0.0
  %488 = vmatprep.subr.mxu0 0.0
  %489 = vmatpush1.msra.mxu0 0.0
  %490 = vmatprep.mubr.f32.mxu0 0.0
  %491 = vmatmul.mubr.f32.gmra.mrb[0].mxu0 %v387
  %v492 = vpop.f32.mrb[0].mxu0
  %v493 = vadd.f32 %v328, %v492
  %v494 = vpop.f32.mrb[0].mxu0
  %495 = vmatprep.mubr.f32.mxu0 0.0
  %496 = vmatmul.mubr.f32.gmra.mrb[0].mxu0 %v390
  %v497 = vpop.f32.mrb[0].mxu0
  %v498 = vadd.f32 %v333, %v497
  %v499 = vpop.f32.mrb[0].mxu0
  %500 = vmatprep.mubr.f32.mxu0 0.0
  %501 = vmatmul.mubr.f32.gmra.mrb[0].mxu0 %v393
  %v502 = vpop.f32.mrb[0].mxu0
  %v503 = vadd.f32 %v338, %v502
  %v504 = vpop.f32.mrb[0].mxu0
  %505 = vmatprep.mubr.f32.mxu0 0.0
  %506 = vmatmul.mubr.f32.gmra.mrb[0].mxu0 %v396
  %v507 = vpop.f32.mrb[0].mxu0
  %v508 = vadd.f32 %v343, %v507
  %v509 = vpop.f32.mrb[0].mxu0
  %510 = vmatprep.mubr.f32.mxu0 0.0
  %511 = vmatmul.mubr.f32.gmra.mrb[0].mxu0 %v399
  %v512 = vpop.f32.mrb[0].mxu0
  %v513 = vadd.f32 %v348, %v512
  %v514 = vpop.f32.mrb[0].mxu0
  %515 = vmatprep.mubr.f32.mxu0 0.0
  %516 = vmatmul.mubr.f32.gmra.mrb[0].mxu0 %v402
  %v517 = vpop.f32.mrb[0].mxu0
  %v518 = vadd.f32 %v353, %v517
  %v519 = vpop.f32.mrb[0].mxu0
  %520 = vmatprep.mubr.f32.mxu0 0.0
  %521 = vmatmul.mubr.f32.gmra.mrb[0].mxu0 %v405
  %v522 = vpop.f32.mrb[0].mxu0
  %v523 = vadd.f32 %v358, %v522
  %v524 = vpop.f32.mrb[0].mxu0
  %525 = vmatprep.mubr.f32.mxu0 0.0
  %526 = vmatmul.mubr.f32.gmra.mrb[0].mxu0 %v408
  %v527 = vpop.f32.mrb[0].mxu0
  %v528 = vadd.f32 %v363, %v527
  %v529 = vpop.f32.mrb[0].mxu0
  %530 = vmatprep.mubr.f32.mxu0 0.0
  %531 = vmatmul.mubr.f32.gmra.mrb[0].mxu0 %v411
  %v532 = vpop.f32.mrb[0].mxu0
  %v533 = vadd.f32 %v368, %v532
  %v534 = vpop.f32.mrb[0].mxu0
  %535 = vmatprep.mubr.f32.mxu0 0.0
  %536 = vmatmul.mubr.f32.gmra.mrb[0].mxu0 %v414
  %v537 = vpop.f32.mrb[0].mxu0
  %v538 = vadd.f32 %v373, %v537
  %v539 = vpop.f32.mrb[0].mxu0
  %540 = vmatprep.mubr.f32.mxu0 0.0
  %541 = vmatmul.mubr.f32.gmra.mrb[0].mxu0 %v417
  %v542 = vpop.f32.mrb[0].mxu0
  %v543 = vadd.f32 %v378, %v542
  %v544 = vpop.f32.mrb[0].mxu0
  %545 = vmatprep.mubr.f32.mxu0 0.0
  %546 = vmatmul.mubr.f32.gmra.mrb[0].mxu0 %v420
  %v547 = vpop.f32.mrb[0].mxu0
  %v548 = vadd.f32 %v383, %v547
  %v549 = vpop.f32.mrb[0].mxu0
  %550 = vdwg.mxu0
  %v551 = vmax.f32 %v493, 0.0
  %v552 = vmax.f32 %v498, 0.0
  %v553 = vmax.f32 %v503, 0.0
  %v554 = vmax.f32 %v508, 0.0
  %v555 = vmax.f32 %v513, 0.0
  %v556 = vmax.f32 %v518, 0.0
  %v557 = vmax.f32 %v523, 0.0
  %v558 = vmax.f32 %v528, 0.0
  %v559 = vmax.f32 %v533, 0.0
  %v560 = vmax.f32 %v538, 0.0
  %v561 = vmax.f32 %v543, 0.0
  %v562 = vmax.f32 %v548, 0.0
  %v563 = vld [vmem:[%s5] sm:$0x1]
  %s564 = sld [smem:[#allocation2]]
  %v565 = vstv %s564
  %vm566 = vcmask 736256
  %v568 = vsel %vm566, %v563, 0
  %vm570 = vcmask 1041408
  %v572 = vsel %vm570, %v562, 0
  %574 = vmatprep.subr.mxu0 0.0
  %575 = vmatpush1.msra.mxu0 %v551
  %576 = vmatprep.subr.mxu0 0.0
  %577 = vmatpush1.msra.mxu0 %v552
  %578 = vmatprep.subr.mxu0 0.0
  %579 = vmatpush1.msra.mxu0 %v553
  %580 = vmatprep.subr.mxu0 0.0
  %581 = vmatpush1.msra.mxu0 %v554
  %582 = vmatprep.subr.mxu0 0.0
  %583 = vmatpush1.msra.mxu0 %v555
  %584 = vmatprep.subr.mxu0 0.0
  %585 = vmatpush1.msra.mxu0 %v556
  %586 = vmatprep.subr.mxu0 0.0
  %587 = vmatpush1.msra.mxu0 %v557
  %588 = vmatprep.subr.mxu0 0.0
  %589 = vmatpush1.msra.mxu0 %v558
  %590 = vmatprep.subr.mxu0 0.0
  %591 = vmatpush1.msra.mxu0 %v559
  %592 = vmatprep.subr.mxu0 0.0
  %593 = vmatpush1.msra.mxu0 %v560
  %594 = vmatprep.subr.mxu0 0.0
  %595 = vmatpush1.msra.mxu0 %v561
  %596 = vmatprep.subr.mxu0 0.0
  %597 = vmatpush1.msra.mxu0 %v572
  %598 = vmatprep.subr.mxu0 0.0
  %599 = vmatpush1.msra.mxu0 0.0
  %600 = vmatprep.subr.mxu0 0.0
  %601 = vmatpush1.msra.mxu0 0.0
  %602 = vmatprep.subr.mxu0 0.0
  %603 = vmatpush1.msra.mxu0 0.0
  %604 = vmatprep.subr.mxu0 0.0
  %605 = vmatpush1.msra.mxu0 0.0
  %606 = vmatprep.subr.mxu0 0.0
  %607 = vmatpush1.msra.mxu0 0.0
  %608 = vmatprep.subr.mxu0 0.0
  %609 = vmatpush1.msra.mxu0 0.0
  %610 = vmatprep.subr.mxu0 0.0
  %611 = vmatpush1.msra.mxu0 0.0
  %612 = vmatprep.subr.mxu0 0.0
  %613 = vmatpush1.msra.mxu0 0.0
  %614 = vmatprep.subr.mxu0 0.0
  %615 = vmatpush1.msra.mxu0 0.0
  %616 = vmatprep.subr.mxu0 0.0
  %617 = vmatpush1.msra.mxu0 0.0
  %618 = vmatprep.subr.mxu0 0.0
  %619 = vmatpush1.msra.mxu0 0.0
  %620 = vmatprep.subr.mxu0 0.0
  %621 = vmatpush1.msra.mxu0 0.0
  %622 = vmatprep.subr.mxu0 0.0
  %623 = vmatpush1.msra.mxu0 0.0
  %624 = vmatprep.subr.mxu0 0.0
  %625 = vmatpush1.msra.mxu0 0.0
  %626 = vmatprep.subr.mxu0 0.0
  %627 = vmatpush1.msra.mxu0 0.0
  %628 = vmatprep.subr.mxu0 0.0
  %629 = vmatpush1.msra.mxu0 0.0
  %630 = vmatprep.subr.mxu0 0.0
  %631 = vmatpush1.msra.mxu0 0.0
  %632 = vmatprep.subr.mxu0 0.0
  %633 = vmatpush1.msra.mxu0 0.0
  %634 = vmatprep.subr.mxu0 0.0
  %635 = vmatpush1.msra.mxu0 0.0
  %636 = vmatprep.subr.mxu0 0.0
  %637 = vmatpush1.msra.mxu0 0.0
  %638 = vmatprep.mubr.f32.mxu0 0.0
  %639 = vmatmul.mubr.f32.gmra.mrb[0].mxu0 %v568
  %v640 = vpop.f32.mrb[0].mxu0
  %v641 = vadd.f32 %v565, %v640
  %v642 = vpop.f32.mrb[0].mxu0
  %643 = vdwg.mxu0
  %644 = vst [vmem:[%s7] sm:$0x1] %v641
  // Predicated region
  $region30: #{mycnn1d_forward.1} parent=0 // pred_check
    _
  $region31: #{mycnn1d_forward.1} parent=0 // pred_check_branch
    %646 = sbr.rel (0) target = $region33
  $region32: #{mycnn1d_forward.1} parent=0 // pred_region
    _
  $region33: #{mycnn1d_forward.1} parent=0 // pred_fallthru
    _
  // Predicated region
  $region34: #{mycnn1d_forward.1} parent=0 // pred_check
    _
  $region35: #{mycnn1d_forward.1} parent=0 // pred_check_branch
    %648 = sbr.rel (0) target = $region37
  $region36: #{mycnn1d_forward.1} parent=0 // pred_region
    _
  $region37: #{mycnn1d_forward.1} parent=0 // pred_fallthru
    _

</llo_original>
